<compile_context>
chip_gen: v5e
topology: v5e:2x2
jax: 0.10.0
libtpu: 0.0.40
codegen_flags: <defaults>
</compile_context>

<pallas_src>
import numpy as np
import jax
import jax.numpy as jnp
from jax.experimental import pallas as pl
from jax.experimental.pallas import tpu as pltpu


def _col_combine_matrix(lc):
    """(lc, lc) f32 matrix: cols [0:lc/2] = 0.25*(column-pair sum),
    cols [lc/2:lc] = 0.25*(column-pair diff)."""
    hw = lc // 2
    m = np.zeros((lc, lc), dtype=np.float32)
    i = np.arange(hw)
    m[2 * i, i] = 0.25
    m[2 * i + 1, i] = 0.25
    m[2 * i, hw + i] = 0.25
    m[2 * i + 1, hw + i] = -0.25
    return jnp.asarray(m)


def _choose_col_chunks(w):
    """Split the W (column) axis into chunks so MXU work stays ~2*chunk flops/element
    and each chunk writes 128-lane-aligned output slabs."""
    if w <= 384:
        return 1
    k = max(1, w // 256)
    while k > 1 and (w % k != 0 or (w // k) % 256 != 0):
        k -= 1
    return k


def _vmem_capacity_bytes():
    try:
        info = pltpu.get_tpu_info()
        for name in ("vmem_capacity_bytes", "vmem_bytes", "vmem_size_bytes"):
            v = getattr(info, name, None)
            if isinstance(v, int) and v > 0:
                return v
    except Exception:
        pass
    return 64 * 1024 * 1024  # conservative default = v7x per-TensorCore VMEM


def _choose_tiles(B, H2, W, itemsize, vmem_cap):
    """Pick (TB images, TH2 subband rows) per grid block.

    Keeps the double-buffered block well under the per-generation VMEM, prefers whole
    images per block (TB up to 16, unrolled in-kernel), tiles H2 only for huge images,
    and keeps >=4 grid steps when the batch allows (megacore + pipelining)."""
    sub = 8 if itemsize >= 4 else 16                       # sublane granularity for TH2
    bytes_per_row = (2 * W + 5 * (W // 2)) * itemsize      # input + 4 subbands + hl
    budget = min(max(vmem_cap // 8, 2 * 1024 * 1024), 16 * 1024 * 1024)
    rows_budget = max(sub, min(budget // bytes_per_row, 1024))
    if H2 <= rows_budget:
        TH2 = H2
        TB = int(max(1, min(B, 16, rows_budget // max(H2, 1))))
        while TB > 1 and B % TB != 0:                      # prefer full (non-partial) blocks
            TB -= 1
    else:
        TB = 1
        TH2 = int(max(sub, (rows_budget // sub) * sub))
    nb = -(-B // TB)
    nh = -(-H2 // TH2)
    if nb * nh < 4 and B > 1:                              # ensure work for both TCs / pipeline
        TB = max(1, -(-B // 4))
        while TB > 1 and B % TB != 0:
            TB -= 1
    return TB, TH2


def _haar_dec_kernel(x_ref, cm_ref, out_ref, hl_ref):
    # x_ref  : (TB, TH2, 2*W)   lanes = [even input row | odd input row]
    # cm_ref : (Lc, Lc)         column pair-combine matrix (0.25 scale folded in)
    # out_ref: (TB, 4, TH2, W2) subbands [LL, LH, HL, HH] (PyTorch filter order)
    # hl_ref : (TB, TH2, W2)    HL subband
    tb = x_ref.shape[0]
    w = x_ref.shape[2] // 2
    lc = cm_ref.shape[0]
    hw = lc // 2
    n_chunks = w // lc
    odt = out_ref.dtype
    cm = cm_ref[...]
    for b in range(tb):                      # static unroll (TB <= 16)
        for k in range(n_chunks):            # static unroll over column chunks
            o = k * lc
            oo = o // 2
            xe = x_ref[b, :, o:o + lc].astype(jnp.float32)           # x[2h,   2w2+j]
            xo = x_ref[b, :, w + o:w + o + lc].astype(jnp.float32)   # x[2h+1, 2w2+j]
            rs = xe + xo                     # row (vertical) sum
            rd = xe - xo                     # row (vertical) diff
            ys = jnp.dot(rs, cm, preferred_element_type=jnp.float32)  # [LL | HL]
            yd = jnp.dot(rd, cm, preferred_element_type=jnp.float32)  # [LH | HH]
            hlv = ys[:, hw:].astype(odt)
            out_ref[b, 0, :, oo:oo + hw] = ys[:, :hw].astype(odt)
            out_ref[b, 1, :, oo:oo + hw] = yd[:, :hw].astype(odt)
            out_ref[b, 2, :, oo:oo + hw] = hlv
            out_ref[b, 3, :, oo:oo + hw] = yd[:, hw:].astype(odt)
            hl_ref[b, :, oo:oo + hw] = hlv


def wavelet_decomp_forward(x, *, stride=2, c_channels=None):
    """Equivalent of waveletDecomp(stride=2, c_channels=C).forward(x), x is NCHW."""
    if stride != 2:
        # TODO(synk): stride==1 branch (replicate pad + dense conv) not implemented.
        raise NotImplementedError("only the stride=2 decomposition path is implemented")
    N, C, H, W = x.shape
    if c_channels is None:
        c_channels = C
    assert c_channels == C, "grouped conv requires c_channels == input channels"
    assert H % 2 == 0 and W % 2 == 0
    H2, W2 = H // 2, W // 2
    B = N * C

    # Keep bf16 / f32 I/O as-is (kernel computes in f32); anything else -> f32.
    if x.dtype == jnp.float32 or x.dtype == jnp.bfloat16:
        io_dtype = x.dtype
    else:
        io_dtype = jnp.float32
    x = x.astype(io_dtype)
    itemsize = np.dtype(io_dtype).itemsize

    # Free view: row b = (n*C + c, h2) holds [x[.., 2*h2, :] | x[.., 2*h2+1, :]].
    xv = x.reshape(B, H2, 2 * W)

    n_chunks = _choose_col_chunks(W)
    Lc = W // n_chunks
    cm = _col_combine_matrix(Lc)

    cap = _vmem_capacity_bytes()
    TB, TH2 = _choose_tiles(B, H2, W, itemsize, cap)
    nb = pl.cdiv(B, TB)
    nh = pl.cdiv(H2, TH2)

    # VMEM budgeting: double-buffered I/O blocks + in-kernel f32 temporaries + matrix.
    bytes_per_row = (2 * W + 5 * W2) * itemsize
    block_io = TB * TH2 * bytes_per_row
    temps = 6 * TH2 * Lc * 4 + 2 * Lc * Lc * 4
    need = 2 * block_io + temps + (4 << 20)
    vmem_limit = int(min(cap * 3 // 4, max(32 << 20, need)))

    out, hl = pl.pallas_call(
        _haar_dec_kernel,
        grid_spec=pl.GridSpec(
            grid=(nb, nh),
            in_specs=[
                pl.BlockSpec((TB, TH2, 2 * W), lambda bi, hi: (bi, hi, 0)),
                pl.BlockSpec((Lc, Lc), lambda bi, hi: (0, 0)),
            ],
            out_specs=[
                pl.BlockSpec((TB, 4, TH2, W2), lambda bi, hi: (bi, 0, hi, 0)),
                pl.BlockSpec((TB, TH2, W2), lambda bi, hi: (bi, hi, 0)),
            ],
        ),
        out_shape=(
            jax.ShapeDtypeStruct((B, 4, H2, W2), io_dtype),
            jax.ShapeDtypeStruct((B, H2, W2), io_dtype),
        ),
        compiler_params=pltpu.CompilerParams(
            dimension_semantics=("parallel", "parallel"),
            vmem_limit_bytes=vmem_limit,
        ),
    )(xv, cm)

    # Zero-cost views: channel order is already 4*c + s (PyTorch grouped-conv order).
    return out.reshape(N, 4 * C, H2, W2), hl.reshape(N, C, H2, W2)


def _reference_forward(x):
    """Exact reference for F.conv2d(x, haar_dec_filters, stride=2, groups=C) / 2."""
    x = x.astype(jnp.float32)
    a = x[:, :, 0::2, 0::2]
    b = x[:, :, 0::2, 1::2]
    c = x[:, :, 1::2, 0::2]
    d = x[:, :, 1::2, 1::2]
    ll = 0.25 * (a + b + c + d)
    lh = 0.25 * (a + b - c - d)
    hl = 0.25 * (a - b + c - d)
    hh = 0.25 * (a - b - c + d)
    n, ch, h2, w2 = ll.shape
    out = jnp.stack([ll, lh, hl, hh], axis=2).reshape(n, 4 * ch, h2, w2)
    return out, hl


if __name__ == "__main__":
    key = jax.random.PRNGKey(0)
    for (N, C, H, W) in [(2, 4, 16, 16), (1, 3, 24, 40)]:
        key, sub = jax.random.split(key)
        x = jax.random.normal(sub, (N, C, H, W), dtype=jnp.float32)

        out, hl = wavelet_decomp_forward(x)
        out = jax.block_until_ready(out)
        hl = jax.block_until_ready(hl)

        ref_out, ref_hl = _reference_forward(x)

        assert out.shape == (N, 4 * C, H // 2, W // 2), out.shape
        assert hl.shape == (N, C, H // 2, W // 2), hl.shape
        np.testing.assert_allclose(np.asarray(out), np.asarray(ref_out), rtol=1e-5, atol=1e-5)
        np.testing.assert_allclose(np.asarray(hl), np.asarray(ref_hl), rtol=1e-5, atol=1e-5)

    print("KERNEL_OK")
</pallas_src>

<mosaic_0001>
module attributes {stable_mosaic.version = 11 : i64} {
  func.func @_haar_dec_kernel(%arg0: i32, %arg1: i32, %arg2: memref<2x8x32xf32, #tpu.memory_space<vmem>>, %arg3: memref<16x16xf32, #tpu.memory_space<vmem>>, %arg4: memref<2x4x8x8xf32, #tpu.memory_space<vmem>>, %arg5: memref<2x8x8xf32, #tpu.memory_space<vmem>>) attributes {dimension_semantics = [#tpu.dimension_semantics<parallel>, #tpu.dimension_semantics<parallel>], iteration_bounds = array<i64: 4, 1>, scalar_prefetch = 0 : i64, scratch_operands = 0 : i64, tpu.core_type = #tpu.core_type<tc>, window_params = [{transform_indices = @transform_0, window_bounds = array<i64: 2, 8, 32>}, {pipeline_mode = #tpu.pipeline_mode<synchronous>, transform_indices = @transform_1, window_bounds = array<i64: 16, 16>}, {transform_indices = @transform_2, window_bounds = array<i64: 2, 4, 8, 8>}, {transform_indices = @transform_3, window_bounds = array<i64: 2, 8, 8>}]} {
    %c0 = arith.constant 0 : index
    %c0_0 = arith.constant 0 : index
    %0 = vector.load %arg3[%c0, %c0_0] : memref<16x16xf32, #tpu.memory_space<vmem>>, vector<16x16xf32>
    %c0_1 = arith.constant 0 : index
    %c0_2 = arith.constant 0 : index
    %c0_3 = arith.constant 0 : index
    %1 = vector.load %arg2[%c0_1, %c0_2, %c0_3] : memref<2x8x32xf32, #tpu.memory_space<vmem>>, vector<1x8x16xf32>
    %2 = vector.shape_cast %1 : vector<1x8x16xf32> to vector<8x16xf32>
    %c0_4 = arith.constant 0 : index
    %c0_5 = arith.constant 0 : index
    %c16 = arith.constant 16 : index
    %3 = vector.load %arg2[%c0_4, %c0_5, %c16] : memref<2x8x32xf32, #tpu.memory_space<vmem>>, vector<1x8x16xf32>
    %4 = vector.shape_cast %3 : vector<1x8x16xf32> to vector<8x16xf32>
    %5 = arith.addf %2, %4 : vector<8x16xf32>
    %6 = arith.subf %2, %4 : vector<8x16xf32>
    %cst = arith.constant dense<0.000000e+00> : vector<8x16xf32>
    %7 = tpu.matmul %5, %0, %cst {dimension_numbers = #tpu.dot_dimension_numbers<[1], [0], [0], [1], [0, 0, 1, 1], [], []>} : vector<8x16xf32>, vector<16x16xf32>, vector<8x16xf32> -> vector<8x16xf32>
    %cst_6 = arith.constant dense<0.000000e+00> : vector<8x16xf32>
    %8 = tpu.matmul %6, %0, %cst_6 {dimension_numbers = #tpu.dot_dimension_numbers<[1], [0], [0], [1], [0, 0, 1, 1], [], []>} : vector<8x16xf32>, vector<16x16xf32>, vector<8x16xf32> -> vector<8x16xf32>
    %9 = vector.extract_strided_slice %7 {offsets = [0, 8], sizes = [8, 8], strides = [1, 1]} : vector<8x16xf32> to vector<8x8xf32>
    %10 = vector.extract_strided_slice %7 {offsets = [0, 0], sizes = [8, 8], strides = [1, 1]} : vector<8x16xf32> to vector<8x8xf32>
    %c0_7 = arith.constant 0 : index
    %c0_8 = arith.constant 0 : index
    %c0_9 = arith.constant 0 : index
    %c0_10 = arith.constant 0 : index
    %11 = vector.load %arg4[%c0_7, %c0_8, %c0_9, %c0_10] : memref<2x4x8x8xf32, #tpu.memory_space<vmem>>, vector<1x1x8x8xf32>
    %12 = vector.shape_cast %11 : vector<1x1x8x8xf32> to vector<8x8xf32>
    %13 = vector.shape_cast %10 : vector<8x8xf32> to vector<1x1x8x8xf32>
    tpu.vector_store %arg4[%c0_7, %c0_8, %c0_9, %c0_10], %13 {strides = array<i32>} : memref<2x4x8x8xf32, #tpu.memory_space<vmem>>, vector<1x1x8x8xf32>,
    %14 = vector.extract_strided_slice %8 {offsets = [0, 0], sizes = [8, 8], strides = [1, 1]} : vector<8x16xf32> to vector<8x8xf32>
    %c0_11 = arith.constant 0 : index
    %c1 = arith.constant 1 : index
    %c0_12 = arith.constant 0 : index
    %c0_13 = arith.constant 0 : index
    %15 = vector.load %arg4[%c0_11, %c1, %c0_12, %c0_13] : memref<2x4x8x8xf32, #tpu.memory_space<vmem>>, vector<1x1x8x8xf32>
    %16 = vector.shape_cast %15 : vector<1x1x8x8xf32> to vector<8x8xf32>
    %17 = vector.shape_cast %14 : vector<8x8xf32> to vector<1x1x8x8xf32>
    tpu.vector_store %arg4[%c0_11, %c1, %c0_12, %c0_13], %17 {strides = array<i32>} : memref<2x4x8x8xf32, #tpu.memory_space<vmem>>, vector<1x1x8x8xf32>,
    %c0_14 = arith.constant 0 : index
    %c2 = arith.constant 2 : index
    %c0_15 = arith.constant 0 : index
    %c0_16 = arith.constant 0 : index
    %18 = vector.load %arg4[%c0_14, %c2, %c0_15, %c0_16] : memref<2x4x8x8xf32, #tpu.memory_space<vmem>>, vector<1x1x8x8xf32>
    %19 = vector.shape_cast %18 : vector<1x1x8x8xf32> to vector<8x8xf32>
    %20 = vector.shape_cast %9 : vector<8x8xf32> to vector<1x1x8x8xf32>
    tpu.vector_store %arg4[%c0_14, %c2, %c0_15, %c0_16], %20 {strides = array<i32>} : memref<2x4x8x8xf32, #tpu.memory_space<vmem>>, vector<1x1x8x8xf32>,
    %21 = vector.extract_strided_slice %8 {offsets = [0, 8], sizes = [8, 8], strides = [1, 1]} : vector<8x16xf32> to vector<8x8xf32>
    %c0_17 = arith.constant 0 : index
    %c3 = arith.constant 3 : index
    %c0_18 = arith.constant 0 : index
    %c0_19 = arith.constant 0 : index
    %22 = vector.load %arg4[%c0_17, %c3, %c0_18, %c0_19] : memref<2x4x8x8xf32, #tpu.memory_space<vmem>>, vector<1x1x8x8xf32>
    %23 = vector.shape_cast %22 : vector<1x1x8x8xf32> to vector<8x8xf32>
    %24 = vector.shape_cast %21 : vector<8x8xf32> to vector<1x1x8x8xf32>
    tpu.vector_store %arg4[%c0_17, %c3, %c0_18, %c0_19], %24 {strides = array<i32>} : memref<2x4x8x8xf32, #tpu.memory_space<vmem>>, vector<1x1x8x8xf32>,
    %c0_20 = arith.constant 0 : index
    %c0_21 = arith.constant 0 : index
    %c0_22 = arith.constant 0 : index
    %25 = vector.load %arg5[%c0_20, %c0_21, %c0_22] : memref<2x8x8xf32, #tpu.memory_space<vmem>>, vector<1x8x8xf32>
    %26 = vector.shape_cast %25 : vector<1x8x8xf32> to vector<8x8xf32>
    %27 = vector.shape_cast %9 : vector<8x8xf32> to vector<1x8x8xf32>
    tpu.vector_store %arg5[%c0_20, %c0_21, %c0_22], %27 {strides = array<i32>} : memref<2x8x8xf32, #tpu.memory_space<vmem>>, vector<1x8x8xf32>,
    %c1_23 = arith.constant 1 : index
    %c0_24 = arith.constant 0 : index
    %c0_25 = arith.constant 0 : index
    %28 = vector.load %arg2[%c1_23, %c0_24, %c0_25] : memref<2x8x32xf32, #tpu.memory_space<vmem>>, vector<1x8x16xf32>
    %29 = vector.shape_cast %28 : vector<1x8x16xf32> to vector<8x16xf32>
    %c1_26 = arith.constant 1 : index
    %c0_27 = arith.constant 0 : index
    %c16_28 = arith.constant 16 : index
    %30 = vector.load %arg2[%c1_26, %c0_27, %c16_28] : memref<2x8x32xf32, #tpu.memory_space<vmem>>, vector<1x8x16xf32>
    %31 = vector.shape_cast %30 : vector<1x8x16xf32> to vector<8x16xf32>
    %32 = arith.addf %29, %31 : vector<8x16xf32>
    %33 = arith.subf %29, %31 : vector<8x16xf32>
    %cst_29 = arith.constant dense<0.000000e+00> : vector<8x16xf32>
    %34 = tpu.matmul %32, %0, %cst_29 {dimension_numbers = #tpu.dot_dimension_numbers<[1], [0], [0], [1], [0, 0, 1, 1], [], []>} : vector<8x16xf32>, vector<16x16xf32>, vector<8x16xf32> -> vector<8x16xf32>
    %cst_30 = arith.constant dense<0.000000e+00> : vector<8x16xf32>
    %35 = tpu.matmul %33, %0, %cst_30 {dimension_numbers = #tpu.dot_dimension_numbers<[1], [0], [0], [1], [0, 0, 1, 1], [], []>} : vector<8x16xf32>, vector<16x16xf32>, vector<8x16xf32> -> vector<8x16xf32>
    %36 = vector.extract_strided_slice %34 {offsets = [0, 8], sizes = [8, 8], strides = [1, 1]} : vector<8x16xf32> to vector<8x8xf32>
    %37 = vector.extract_strided_slice %34 {offsets = [0, 0], sizes = [8, 8], strides = [1, 1]} : vector<8x16xf32> to vector<8x8xf32>
    %c1_31 = arith.constant 1 : index
    %c0_32 = arith.constant 0 : index
    %c0_33 = arith.constant 0 : index
    %c0_34 = arith.constant 0 : index
    %38 = vector.load %arg4[%c1_31, %c0_32, %c0_33, %c0_34] : memref<2x4x8x8xf32, #tpu.memory_space<vmem>>, vector<1x1x8x8xf32>
    %39 = vector.shape_cast %38 : vector<1x1x8x8xf32> to vector<8x8xf32>
    %40 = vector.shape_cast %37 : vector<8x8xf32> to vector<1x1x8x8xf32>
    tpu.vector_store %arg4[%c1_31, %c0_32, %c0_33, %c0_34], %40 {strides = array<i32>} : memref<2x4x8x8xf32, #tpu.memory_space<vmem>>, vector<1x1x8x8xf32>,
    %41 = vector.extract_strided_slice %35 {offsets = [0, 0], sizes = [8, 8], strides = [1, 1]} : vector<8x16xf32> to vector<8x8xf32>
    %c1_35 = arith.constant 1 : index
    %c1_36 = arith.constant 1 : index
    %c0_37 = arith.constant 0 : index
    %c0_38 = arith.constant 0 : index
    %42 = vector.load %arg4[%c1_35, %c1_36, %c0_37, %c0_38] : memref<2x4x8x8xf32, #tpu.memory_space<vmem>>, vector<1x1x8x8xf32>
    %43 = vector.shape_cast %42 : vector<1x1x8x8xf32> to vector<8x8xf32>
    %44 = vector.shape_cast %41 : vector<8x8xf32> to vector<1x1x8x8xf32>
    tpu.vector_store %arg4[%c1_35, %c1_36, %c0_37, %c0_38], %44 {strides = array<i32>} : memref<2x4x8x8xf32, #tpu.memory_space<vmem>>, vector<1x1x8x8xf32>,
    %c1_39 = arith.constant 1 : index
    %c2_40 = arith.constant 2 : index
    %c0_41 = arith.constant 0 : index
    %c0_42 = arith.constant 0 : index
    %45 = vector.load %arg4[%c1_39, %c2_40, %c0_41, %c0_42] : memref<2x4x8x8xf32, #tpu.memory_space<vmem>>, vector<1x1x8x8xf32>
    %46 = vector.shape_cast %45 : vector<1x1x8x8xf32> to vector<8x8xf32>
    %47 = vector.shape_cast %36 : vector<8x8xf32> to vector<1x1x8x8xf32>
    tpu.vector_store %arg4[%c1_39, %c2_40, %c0_41, %c0_42], %47 {strides = array<i32>} : memref<2x4x8x8xf32, #tpu.memory_space<vmem>>, vector<1x1x8x8xf32>,
    %48 = vector.extract_strided_slice %35 {offsets = [0, 8], sizes = [8, 8], strides = [1, 1]} : vector<8x16xf32> to vector<8x8xf32>
    %c1_43 = arith.constant 1 : index
    %c3_44 = arith.constant 3 : index
    %c0_45 = arith.constant 0 : index
    %c0_46 = arith.constant 0 : index
    %49 = vector.load %arg4[%c1_43, %c3_44, %c0_45, %c0_46] : memref<2x4x8x8xf32, #tpu.memory_space<vmem>>, vector<1x1x8x8xf32>
    %50 = vector.shape_cast %49 : vector<1x1x8x8xf32> to vector<8x8xf32>
    %51 = vector.shape_cast %48 : vector<8x8xf32> to vector<1x1x8x8xf32>
    tpu.vector_store %arg4[%c1_43, %c3_44, %c0_45, %c0_46], %51 {strides = array<i32>} : memref<2x4x8x8xf32, #tpu.memory_space<vmem>>, vector<1x1x8x8xf32>,
    %c1_47 = arith.constant 1 : index
    %c0_48 = arith.constant 0 : index
    %c0_49 = arith.constant 0 : index
    %52 = vector.load %arg5[%c1_47, %c0_48, %c0_49] : memref<2x8x8xf32, #tpu.memory_space<vmem>>, vector<1x8x8xf32>
    %53 = vector.shape_cast %52 : vector<1x8x8xf32> to vector<8x8xf32>
    %54 = vector.shape_cast %36 : vector<8x8xf32> to vector<1x8x8xf32>
    tpu.vector_store %arg5[%c1_47, %c0_48, %c0_49], %54 {strides = array<i32>} : memref<2x8x8xf32, #tpu.memory_space<vmem>>, vector<1x8x8xf32>,
    return
  }
  func.func @transform_0(%arg0: i32, %arg1: i32) -> (i32, i32, i32) {
    %c0_i32 = arith.constant 0 : i32
    %c0_i32_0 = arith.constant 0 : i32
    return %arg0, %arg1, %c0_i32 : i32, i32, i32
  }
  func.func @transform_1(%arg0: i32, %arg1: i32) -> (i32, i32) {
    %c0_i32 = arith.constant 0 : i32
    %c0_i32_0 = arith.constant 0 : i32
    %c0_i32_1 = arith.constant 0 : i32
    return %c0_i32, %c0_i32_0 : i32, i32
  }
  func.func @transform_2(%arg0: i32, %arg1: i32) -> (i32, i32, i32, i32) {
    %c0_i32 = arith.constant 0 : i32
    %c0_i32_0 = arith.constant 0 : i32
    %c0_i32_1 = arith.constant 0 : i32
    return %arg0, %c0_i32, %arg1, %c0_i32_0 : i32, i32, i32, i32
  }
  func.func @transform_3(%arg0: i32, %arg1: i32) -> (i32, i32, i32) {
    %c0_i32 = arith.constant 0 : i32
    %c0_i32_0 = arith.constant 0 : i32
    return %arg0, %arg1, %c0_i32 : i32, i32, i32
  }
}

</mosaic_0001>

<llo_original>
// kernel: tpu_custom_call.1
$region0: #{tpu_custom_call.1}
  #allocation0 [shape = 'u32[]', space=smem, size = 0x4, offset = 0x4, fixed_abs, tag = 'smem constant byte address 0x4 - core index']
  #allocation1 [shape = 'u32[72,128]{1,0:T(1,128)}', space=vmem, size = 0x9000, scoped, tag = 'internal scratch']
  %s0 = inlined_call_operand.hbm [shape: f32[8,8,32], index: 0, kind: input, shape index: {}]
  %s1 = inlined_call_operand.hbm [shape: f32[16,16], index: 1, kind: input, shape index: {}]
  %s2 = inlined_call_operand.hbm [shape: f32[8,4,8,8], index: 2, kind: output, shape index: {0}]
  %s3 = inlined_call_operand.hbm [shape: f32[8,8,8], index: 3, kind: output, shape index: {1}]
  %4 = xla_tuple %s2, %s3
  %s5 = sld [smem:[#allocation0]]
  $region57: #{tpu_custom_call.1} parent=0
    _
  %s7 = ssub.s32 1, %s5
  %s8 = scalar_select 0, %s7, %s5
  $region1: #{tpu_custom_call.1} parent=0
    #allocation2 [shape = 'u8[16384]{0}', space=vmem, size = 0x4000, scoped, tag = 'input window, operand 0']
    #allocation3 [shape = 's32[2]{0}', space=sflag, size = 0x8, scoped, tag = 'scoped memory for tpu_custom_call.1']
    #allocation4 [shape = 's32[2]{0}', space=sflag, size = 0x8, scoped, tag = 'scoped memory for tpu_custom_call.1']
    #allocation5 [shape = 'u8[8192]{0}', space=vmem, size = 0x2000, scoped, tag = 'input window, operand 1, single buffered']
    #allocation6 [shape = 's32[1]{0}', space=sflag, size = 0x4, scoped, tag = 'scoped memory for tpu_custom_call.1']
    #allocation7 [shape = 'u8[65536]{0}', space=vmem, size = 0x10000, scoped, tag = 'output window, operand 0']
    #allocation8 [shape = 'u8[16384]{0}', space=vmem, size = 0x4000, scoped, tag = 'output window, operand 1']
    #allocation9 [shape = 's32[2]{0}', space=sflag, size = 0x8, scoped, tag = 'scoped memory for tpu_custom_call.1']
    %9 = vsyncpa [#allocation3], 0
    %s10 = scalar_lea.sflag [#allocation3], 1
    %11 = vsyncpa %s10, 0
    %12 = vsyncpa [#allocation6], 0
    %13 = vsyncpa [#allocation4], 0
    %s14 = scalar_lea.sflag [#allocation4], 1
    %15 = vsyncpa %s14, 0
    %16 = vsyncpa [#allocation9], 0
    %s17 = scalar_lea.sflag [#allocation9], 1
    %18 = vsyncpa %s17, 0
    loop: start=0, step=1, limit=6
    $region2: #{tpu_custom_call.1} parent=1 // loop_pre_header
      _
    $region3: #{tpu_custom_call.1} parent=1 // loop_header
      %s20 = sphi 0, %s24
      %p21 = scmp.ge.s32.totalorder %s20, 6
      %s27 = sphi 0, %s39
      %s28 = sphi 0, %s35
      %s29 = sphi 0, %s27
      %s30 = sphi 0, %s28
      %s31 = sphi 0, %s29
      %s32 = sphi 0, %s30
      %s44 = sphi 0, %s46
      %s47 = sphi 0, %s44
      %s48 = sphi 0, %s47
      %s64 = sphi 0, %s48
      %s68 = sphi 0, %s68
      %s70 = sphi 0, %s68
      %s71 = sphi 0, %s70
      %s85 = sphi 0, %s71
      %s93 = sphi 0, %s95
      %s96 = sphi 0, %s93
      %s97 = sphi 0, %s96
      %s113 = sphi 0, %s97
      %s121 = sphi 0, %s123
      %s124 = sphi 0, %s121
      %s125 = sphi 0, %s124
      %s141 = sphi 0, %s125
    $region4: #{tpu_custom_call.1} parent=1 // loop_header_branch
      %23 = sbr.rel (%p21) target = $region8
    $region5: #{tpu_custom_call.1} parent=1 // loop_body
      %s25 = ssub.s32 %s20, 1
      %s26 = ssub.s32 %s20, 2
      %s33 = sadd.s32 1, %s28
      %p34 = scmp.ge.s32.totalorder %s33, 1
      %s35 = scalar_select %p34, 0, %s33
      %s36 = sadd.s32 1, %s27
      %s37 = scalar_select %p34, %s36, %s27
      %p38 = scmp.ge.s32.totalorder %s37, 4
      %s39 = scalar_select %p38, 0, %s37
      %s40 = ssub.s32 %s27, %s39
      %s41 = ssub.s32 %s28, %s35
      %s42 = sor.u32 %s40, %s41
      %p43 = scmp.eq.s32.totalorder %s42, 0
      %s45 = sadd.s32 %s44, 1
      %s46 = scalar_select %p43, %s44, %s45
      %p49 = pneg %p43
      %p50 = scmp.eq.s32.totalorder %s20, 3
      %p51 = por %p49, %p50
      %p52 = scmp.ne.s32.totalorder %s44, %s47
      %p53 = scmp.eq.s32.totalorder %s20, 0
      %p54 = por %p52, %p53
      %p55 = scmp.ne.s32.totalorder %s44, %s47
      %p56 = scmp.eq.s32.totalorder %s25, 3
      %p57 = por %p55, %p56
      %p58 = scmp.ne.s32.totalorder %s47, %s48
      %p59 = scmp.eq.s32.totalorder %s25, 0
      %p60 = por %p58, %p59
      %p61 = scmp.ne.s32.totalorder %s47, %s48
      %p62 = scmp.eq.s32.totalorder %s26, 3
      %p63 = por %p61, %p62
      %p65 = scmp.ne.s32.totalorder %s48, %s64
      %p66 = scmp.eq.s32.totalorder %s26, 0
      %p67 = por %p65, %p66
      %s69 = sadd.s32 %s68, 1
      %p72 = scmp.eq.s32.totalorder %s20, 3
      %p73 = scmp.ne.s32.totalorder %s68, %s70
      %p74 = scmp.eq.s32.totalorder %s20, 0
      %p75 = por %p73, %p74
      %p76 = scmp.ne.s32.totalorder %s68, %s70
      %p77 = scmp.eq.s32.totalorder %s25, 3
      %p78 = por %p76, %p77
      %p79 = scmp.ne.s32.totalorder %s70, %s71
      %p80 = scmp.eq.s32.totalorder %s25, 0
      %p81 = por %p79, %p80
      %p82 = scmp.ne.s32.totalorder %s70, %s71
      %p83 = scmp.eq.s32.totalorder %s26, 3
      %p84 = por %p82, %p83
      %p86 = scmp.ne.s32.totalorder %s71, %s85
      %p87 = scmp.eq.s32.totalorder %s26, 0
      %p88 = por %p86, %p87
      %s89 = ssub.s32 %s27, %s39
      %s90 = ssub.s32 %s28, %s35
      %s91 = sor.u32 %s89, %s90
      %p92 = scmp.eq.s32.totalorder %s91, 0
      %s94 = sadd.s32 %s93, 1
      %s95 = scalar_select %p92, %s93, %s94
      %p98 = pneg %p92
      %p99 = scmp.eq.s32.totalorder %s20, 3
      %p100 = por %p98, %p99
      %p101 = scmp.ne.s32.totalorder %s93, %s96
      %p102 = scmp.eq.s32.totalorder %s20, 0
      %p103 = por %p101, %p102
      %p104 = scmp.ne.s32.totalorder %s93, %s96
      %p105 = scmp.eq.s32.totalorder %s25, 3
      %p106 = por %p104, %p105
      %p107 = scmp.ne.s32.totalorder %s96, %s97
      %p108 = scmp.eq.s32.totalorder %s25, 0
      %p109 = por %p107, %p108
      %p110 = scmp.ne.s32.totalorder %s96, %s97
      %p111 = scmp.eq.s32.totalorder %s26, 3
      %p112 = por %p110, %p111
      %p114 = scmp.ne.s32.totalorder %s97, %s113
      %p115 = scmp.eq.s32.totalorder %s26, 0
      %p116 = por %p114, %p115
      %s117 = ssub.s32 %s27, %s39
      %s118 = ssub.s32 %s28, %s35
      %s119 = sor.u32 %s117, %s118
      %p120 = scmp.eq.s32.totalorder %s119, 0
      %s122 = sadd.s32 %s121, 1
      %s123 = scalar_select %p120, %s121, %s122
      %p126 = pneg %p120
      %p127 = scmp.eq.s32.totalorder %s20, 3
      %p128 = por %p126, %p127
      %p129 = scmp.ne.s32.totalorder %s121, %s124
      %p130 = scmp.eq.s32.totalorder %s20, 0
      %p131 = por %p129, %p130
      %p132 = scmp.ne.s32.totalorder %s121, %s124
      %p133 = scmp.eq.s32.totalorder %s25, 3
      %p134 = por %p132, %p133
      %p135 = scmp.ne.s32.totalorder %s124, %s125
      %p136 = scmp.eq.s32.totalorder %s25, 0
      %p137 = por %p135, %p136
      %p138 = scmp.ne.s32.totalorder %s124, %s125
      %p139 = scmp.eq.s32.totalorder %s26, 3
      %p140 = por %p138, %p139
      %p142 = scmp.ne.s32.totalorder %s125, %s141
      %p143 = scmp.eq.s32.totalorder %s26, 0
      %p144 = por %p142, %p143
      %p145 = scmp.le.s32.totalorder 1, %s20
      %p146 = scmp.lt.s32.totalorder %s20, 5
      %p147 = pnand %p145, %p146
      %p148 = pneg %p147
      // Predicated region
      $region9: #{tpu_custom_call.1} parent=5 // pred_check
        _
      $region10: #{tpu_custom_call.1} parent=5 // pred_check_branch
        %150 = sbr.rel (%p147) target = $region12
      $region11: #{tpu_custom_call.1} parent=5 // pred_region
        %s151 = ssub.s32 %s20, 1
        // Predicated region
        $region13: #{tpu_custom_call.1} parent=11 // pred_check
          %p152 = pneg %p81
        $region14: #{tpu_custom_call.1} parent=11 // pred_check_branch
          %154 = sbr.rel (%p152) target = $region16
        $region15: #{tpu_custom_call.1} parent=11 // pred_region
          %156 = vsyncadd [#allocation6], 0
          %s157 = sshll.u32 %s1, 4
          %s158 = int_to_ptr.hbm [resolvable:$true] %s157
          %s159 = sshll.u32 [#allocation5], 4
          %s160 = int_to_ptr.vmem [resolvable:$true] %s159
          %165 = dma.hbm_to_vmem [thread:$0]  %s158, 256, %s160, [#allocation6], 128, 128, 8
        $region16: #{tpu_custom_call.1} parent=11 // pred_fallthru
          _
      $region12: #{tpu_custom_call.1} parent=5 // pred_fallthru
        _
      %p166 = scmp.lt.s32.totalorder %s20, 4
      // Predicated region
      $region17: #{tpu_custom_call.1} parent=5 // pred_check
        %p167 = pneg %p166
      $region18: #{tpu_custom_call.1} parent=5 // pred_check_branch
        %169 = sbr.rel (%p167) target = $region20
      $region19: #{tpu_custom_call.1} parent=5 // pred_region
        // Predicated region
        $region21: #{tpu_custom_call.1} parent=19 // pred_check
          %p170 = pneg %p54
        $region22: #{tpu_custom_call.1} parent=19 // pred_check_branch
          %172 = sbr.rel (%p170) target = $region24
        $region23: #{tpu_custom_call.1} parent=19 // pred_region
          %s173 = sand.u32 %s44, 1
          %s174 = scalar_lea.sflag [#allocation3], %s173
          %s175 = sand.u32 %s44, 1
          %s176 = smul.addr %s175, 16
          %s177 = scalar_lea.vmem [#allocation2], %s176
          %s178 = smul.u32 2, %s27
          %180 = vsyncadd %s174, 0
          %s181 = sadd.s32 %s28, %s178
          %s182 = smul.addr %s181, 8
          %s183 = scalar_lea.hbm %s0, %s182
          %s184 = sshll.u32 %s183, 4
          %s185 = int_to_ptr.hbm [resolvable:$true] %s184
          %s186 = sshll.u32 %s177, 4
          %s187 = int_to_ptr.vmem [resolvable:$true] %s186
          %192 = dma.hbm_to_vmem [thread:$0]  %s185, 256, %s187, %s174, 128, 128, 8
        $region24: #{tpu_custom_call.1} parent=19 // pred_fallthru
          _
      $region20: #{tpu_custom_call.1} parent=5 // pred_fallthru
        _
      %p193 = scmp.le.s32.totalorder 1, %s20
      %p194 = scmp.lt.s32.totalorder %s20, 5
      %p195 = pnand %p193, %p194
      %p196 = pneg %p195
      // Predicated region
      $region25: #{tpu_custom_call.1} parent=5 // pred_check
        _
      $region26: #{tpu_custom_call.1} parent=5 // pred_check_branch
        %198 = sbr.rel (%p195) target = $region28
      $region27: #{tpu_custom_call.1} parent=5 // pred_region
        %s199 = ssub.s32 %s20, 1
        %s200 = sand.u32 %s47, 1
        %s201 = scalar_lea.sflag [#allocation3], %s200
        %s202 = sand.u32 %s47, 1
        %s203 = smul.addr %s202, 16
        %s204 = scalar_lea.vmem [#allocation2], %s203
        // Predicated region
        $region29: #{tpu_custom_call.1} parent=27 // pred_check
          %p205 = pneg %p60
        $region30: #{tpu_custom_call.1} parent=27 // pred_check_branch
          %207 = sbr.rel (%p205) target = $region32
        $region31: #{tpu_custom_call.1} parent=27 // pred_region
          %209 = dma.done %s201, 256
        $region32: #{tpu_custom_call.1} parent=27 // pred_fallthru
          _
        // Predicated region
        $region33: #{tpu_custom_call.1} parent=27 // pred_check
          %p210 = pneg %p81
        $region34: #{tpu_custom_call.1} parent=27 // pred_check_branch
          %212 = sbr.rel (%p210) target = $region36
        $region35: #{tpu_custom_call.1} parent=27 // pred_region
          %214 = dma.done [#allocation6], 256
        $region36: #{tpu_custom_call.1} parent=27 // pred_fallthru
          _
        %s215 = sand.u32 %s47, 1
        %s216 = scalar_lea.sflag [#allocation3], %s215
        %s217 = sand.u32 %s47, 1
        %s218 = smul.addr %s217, 16
        %s219 = scalar_lea.vmem [#allocation2], %s218
        %p220 = pneg %p60
        %p221 = pneg %p57
        %p222 = pneg %p81
        %p223 = pneg %p78
        %p224 = pneg %p109
        %p225 = pneg %p106
        %s226 = sand.u32 %s96, 1
        %s227 = scalar_lea.sflag [#allocation4], %s226
        %s228 = sand.u32 %s96, 1
        %s229 = smul.addr %s228, 64
        %s230 = scalar_lea.vmem [#allocation7], %s229
        %p231 = pneg %p137
        %p232 = pneg %p134
        %s233 = sand.u32 %s124, 1
        %s234 = scalar_lea.sflag [#allocation9], %s233
        %s235 = sand.u32 %s124, 1
        %s236 = smul.addr %s235, 16
        %s237 = scalar_lea.vmem [#allocation8], %s236
        %s238 = smul.u32 2, %s29
        %s239 = smul.u32 2, %s29
        %s240 = smul.u32 2, %s29
        %v241 = vld [vmem:[#allocation5] sm:$0xff]
        %v242 = vld [vmem:[#allocation5 + $0x8] sm:$0xff]
        %v243 = vld [vmem:[%s204] sm:$0xff]
        %245 = vrot.lane.b32.xlu0 %v243, 112
        %v246 = vpop.permute.xlu0 %245
        %v248 = vadd.f32 %v243, %v246
        %v249 = vsub.f32 %v243, %v246
        %vm250 = vcmask 130048
        %v252 = vsel %vm250, %v248, 0
        %254 = vmatpush.msra.mxu0 0.0
        %255 = vmatpush.msra.mxu0 0.0
        %256 = vmatpush.msra.mxu0 0.0
        %257 = vmatpush.msra.mxu0 0.0
        %258 = vmatpush.msra.mxu0 0.0
        %259 = vmatpush.msra.mxu0 0.0
        %260 = vmatpush.msra.mxu0 0.0
        %261 = vmatpush.msra.mxu0 0.0
        %262 = vmatpush.msra.mxu0 0.0
        %263 = vmatpush.msra.mxu0 0.0
        %264 = vmatpush.msra.mxu0 0.0
        %265 = vmatpush.msra.mxu0 0.0
        %266 = vmatpush.msra.mxu0 0.0
        %267 = vmatpush.msra.mxu0 0.0
        %268 = vmatpush.msra.mxu0 %v242
        %269 = vmatpush.msra.mxu0 %v241
        %270 = vmatmul.f32.gmra.mxu0 %v252
        %v271 = vpop.f32.mrf.mxu0
        %v272 = vadd.f32 0.0, %v271
        %273 = vdwg.mxu0
        %v275 = vsel %vm250, %v249, 0
        %277 = vmatpush.msra.mxu0 0.0
        %278 = vmatpush.msra.mxu0 0.0
        %279 = vmatpush.msra.mxu0 0.0
        %280 = vmatpush.msra.mxu0 0.0
        %281 = vmatpush.msra.mxu0 0.0
        %282 = vmatpush.msra.mxu0 0.0
        %283 = vmatpush.msra.mxu0 0.0
        %284 = vmatpush.msra.mxu0 0.0
        %285 = vmatpush.msra.mxu0 0.0
        %286 = vmatpush.msra.mxu0 0.0
        %287 = vmatpush.msra.mxu0 0.0
        %288 = vmatpush.msra.mxu0 0.0
        %289 = vmatpush.msra.mxu0 0.0
        %290 = vmatpush.msra.mxu0 0.0
        %291 = vmatpush.msra.mxu0 %v242
        %292 = vmatpush.msra.mxu0 %v241
        %293 = vmatmul.f32.gmra.mxu0 %v275
        %v294 = vpop.f32.mrf.mxu0
        %v295 = vadd.f32 0.0, %v294
        %296 = vdwg.mxu0
        %vm297 = vcmask 64512
        %298 = vst.msk [vmem:[%s230] sm:$0xff] %vm297, %v272
        %s299 = scalar_lea.vmem %s230, 8 [#allocation7]
        %300 = vst.msk [vmem:[%s299] sm:$0xff] %vm297, %v295
        %302 = vrot.lane.b32.xlu0 %v272, 120
        %v303 = vpop.permute.xlu0 %302
        %s305 = scalar_lea.vmem %s230, 16 [#allocation7]
        %306 = vst.msk [vmem:[%s305] sm:$0xff] %vm297, %v303
        %308 = vrot.lane.b32.xlu0 %v295, 120
        %v309 = vpop.permute.xlu0 %308
        %s311 = scalar_lea.vmem %s230, 24 [#allocation7]
        %312 = vst.msk [vmem:[%s311] sm:$0xff] %vm297, %v309
        %313 = vst.msk [vmem:[%s237] sm:$0xff] %vm297, %v303
        %s314 = scalar_lea.vmem %s204, 8 [#allocation2]
        %v315 = vld [vmem:[%s314] sm:$0xff]
        %317 = vrot.lane.b32.xlu0 %v315, 112
        %v318 = vpop.permute.xlu0 %317
        %v320 = vadd.f32 %v315, %v318
        %v321 = vsub.f32 %v315, %v318
        %v323 = vsel %vm250, %v320, 0
        %325 = vmatpush.msra.mxu0 0.0
        %326 = vmatpush.msra.mxu0 0.0
        %327 = vmatpush.msra.mxu0 0.0
        %328 = vmatpush.msra.mxu0 0.0
        %329 = vmatpush.msra.mxu0 0.0
        %330 = vmatpush.msra.mxu0 0.0
        %331 = vmatpush.msra.mxu0 0.0
        %332 = vmatpush.msra.mxu0 0.0
        %333 = vmatpush.msra.mxu0 0.0
        %334 = vmatpush.msra.mxu0 0.0
        %335 = vmatpush.msra.mxu0 0.0
        %336 = vmatpush.msra.mxu0 0.0
        %337 = vmatpush.msra.mxu0 0.0
        %338 = vmatpush.msra.mxu0 0.0
        %339 = vmatpush.msra.mxu0 %v242
        %340 = vmatpush.msra.mxu0 %v241
        %341 = vmatmul.f32.gmra.mxu0 %v323
        %v342 = vpop.f32.mrf.mxu0
        %v343 = vadd.f32 0.0, %v342
        %344 = vdwg.mxu0
        %v346 = vsel %vm250, %v321, 0
        %348 = vmatpush.msra.mxu0 0.0
        %349 = vmatpush.msra.mxu0 0.0
        %350 = vmatpush.msra.mxu0 0.0
        %351 = vmatpush.msra.mxu0 0.0
        %352 = vmatpush.msra.mxu0 0.0
        %353 = vmatpush.msra.mxu0 0.0
        %354 = vmatpush.msra.mxu0 0.0
        %355 = vmatpush.msra.mxu0 0.0
        %356 = vmatpush.msra.mxu0 0.0
        %357 = vmatpush.msra.mxu0 0.0
        %358 = vmatpush.msra.mxu0 0.0
        %359 = vmatpush.msra.mxu0 0.0
        %360 = vmatpush.msra.mxu0 0.0
        %361 = vmatpush.msra.mxu0 0.0
        %362 = vmatpush.msra.mxu0 %v242
        %363 = vmatpush.msra.mxu0 %v241
        %364 = vmatmul.f32.gmra.mxu0 %v346
        %v365 = vpop.f32.mrf.mxu0
        %v366 = vadd.f32 0.0, %v365
        %367 = vdwg.mxu0
        %s368 = scalar_lea.vmem %s230, 32 [#allocation7]
        %369 = vst.msk [vmem:[%s368] sm:$0xff] %vm297, %v343
        %s370 = scalar_lea.vmem %s230, 40 [#allocation7]
        %371 = vst.msk [vmem:[%s370] sm:$0xff] %vm297, %v366
        %373 = vrot.lane.b32.xlu0 %v343, 120
        %v374 = vpop.permute.xlu0 %373
        %s376 = scalar_lea.vmem %s230, 48 [#allocation7]
        %377 = vst.msk [vmem:[%s376] sm:$0xff] %vm297, %v374
        %379 = vrot.lane.b32.xlu0 %v366, 120
        %v380 = vpop.permute.xlu0 %379
        %s382 = scalar_lea.vmem %s230, 56 [#allocation7]
        %383 = vst.msk [vmem:[%s382] sm:$0xff] %vm297, %v380
        %s384 = scalar_lea.vmem %s237, 8 [#allocation8]
        %385 = vst.msk [vmem:[%s384] sm:$0xff] %vm297, %v374
        %s386 = sand.u32 %s96, 1
        %s387 = scalar_lea.sflag [#allocation4], %s386
        %s388 = sand.u32 %s96, 1
        %s389 = smul.addr %s388, 64
        %s390 = scalar_lea.vmem [#allocation7], %s389
        %s391 = sand.u32 %s124, 1
        %s392 = scalar_lea.sflag [#allocation9], %s391
        %s393 = sand.u32 %s124, 1
        %s394 = smul.addr %s393, 16
        %s395 = scalar_lea.vmem [#allocation8], %s394
        // Predicated region
        $region37: #{tpu_custom_call.1} parent=27 // pred_check
          %p396 = pneg %p106
        $region38: #{tpu_custom_call.1} parent=27 // pred_check_branch
          %398 = sbr.rel (%p396) target = $region40
        $region39: #{tpu_custom_call.1} parent=27 // pred_region
          %s399 = smul.u32 2, %s29
          %401 = vsyncadd %s387, 0
          %s402 = smul.addr %s399, 4
          %s403 = sadd.s32 %s30, %s402
          %s404 = smul.addr %s403, 8
          %s405 = scalar_lea.hbm %s2, %s404
          %s406 = sshll.u32 %s390, 4
          %s407 = int_to_ptr.vmem [resolvable:$true] %s406
          %s408 = sshll.u32 %s405, 4
          %s409 = int_to_ptr.hbm [resolvable:$true] %s408
          %414 = dma.vmem_to_hbm [thread:$0]  %s407, 1024, %s409, %s387, 128, 128, 8
        $region40: #{tpu_custom_call.1} parent=27 // pred_fallthru
          _
        // Predicated region
        $region41: #{tpu_custom_call.1} parent=27 // pred_check
          %p415 = pneg %p134
        $region42: #{tpu_custom_call.1} parent=27 // pred_check_branch
          %417 = sbr.rel (%p415) target = $region44
        $region43: #{tpu_custom_call.1} parent=27 // pred_region
          %s418 = smul.u32 2, %s29
          %420 = vsyncadd %s392, 0
          %s421 = sadd.s32 %s30, %s418
          %s422 = smul.addr %s421, 8
          %s423 = scalar_lea.hbm %s3, %s422
          %s424 = sshll.u32 %s395, 4
          %s425 = int_to_ptr.vmem [resolvable:$true] %s424
          %s426 = sshll.u32 %s423, 4
          %s427 = int_to_ptr.hbm [resolvable:$true] %s426
          %432 = dma.vmem_to_hbm [thread:$0]  %s425, 256, %s427, %s392, 128, 128, 8
        $region44: #{tpu_custom_call.1} parent=27 // pred_fallthru
          _
      $region28: #{tpu_custom_call.1} parent=5 // pred_fallthru
        _
      %p433 = scmp.le.s32.totalorder 2, %s20
      // Predicated region
      $region45: #{tpu_custom_call.1} parent=5 // pred_check
        %p434 = pneg %p433
      $region46: #{tpu_custom_call.1} parent=5 // pred_check_branch
        %436 = sbr.rel (%p434) target = $region48
      $region47: #{tpu_custom_call.1} parent=5 // pred_region
        %s437 = ssub.s32 %s20, 2
        // Predicated region
        $region49: #{tpu_custom_call.1} parent=47 // pred_check
          %p438 = pneg %p112
        $region50: #{tpu_custom_call.1} parent=47 // pred_check_branch
          %440 = sbr.rel (%p438) target = $region52
        $region51: #{tpu_custom_call.1} parent=47 // pred_region
          %s441 = sand.u32 %s97, 1
          %s442 = scalar_lea.sflag [#allocation4], %s441
          %s443 = sand.u32 %s97, 1
          %s444 = smul.addr %s443, 64
          %s445 = scalar_lea.vmem [#allocation7], %s444
          %447 = dma.done %s442, 1024
        $region52: #{tpu_custom_call.1} parent=47 // pred_fallthru
          _
        // Predicated region
        $region53: #{tpu_custom_call.1} parent=47 // pred_check
          %p448 = pneg %p140
        $region54: #{tpu_custom_call.1} parent=47 // pred_check_branch
          %450 = sbr.rel (%p448) target = $region56
        $region55: #{tpu_custom_call.1} parent=47 // pred_region
          %s451 = sand.u32 %s125, 1
          %s452 = scalar_lea.sflag [#allocation9], %s451
          %s453 = sand.u32 %s125, 1
          %s454 = smul.addr %s453, 16
          %s455 = scalar_lea.vmem [#allocation8], %s454
          %457 = dma.done %s452, 256
        $region56: #{tpu_custom_call.1} parent=47 // pred_fallthru
          _
      $region48: #{tpu_custom_call.1} parent=5 // pred_fallthru
        _
    $region6: #{tpu_custom_call.1} parent=1 // loop_footer
      %s24 = sadd.s32 1, %s20
    $region7: #{tpu_custom_call.1} parent=1 // loop_footer_branch
      %19 = sbr.rel target = $region3
    $region8: #{tpu_custom_call.1} parent=1 // loop_exit
      _
    %458 = vsyncpa [#allocation3], 1
    %s459 = scalar_lea.sflag [#allocation3], 1
    %460 = vsyncpa %s459, 1
    %461 = vsyncpa [#allocation6], 1
    %462 = vsyncpa [#allocation4], 1
    %s463 = scalar_lea.sflag [#allocation4], 1
    %464 = vsyncpa %s463, 1
    %465 = vsyncpa [#allocation9], 1
    %s466 = scalar_lea.sflag [#allocation9], 1
    %467 = vsyncpa %s466, 1

</llo_original>
